<compile_context>
chip_gen: v6e
topology: v6e:2x2x1
jax: 0.10.0
libtpu: 0.0.40
codegen_flags: <defaults>
</compile_context>

<pallas_src>
import jax
import jax.numpy as jnp
from jax.experimental import pallas as pl
from jax.experimental.pallas import tpu as pltpu

# ----------------------------- model dims (scaled-down) ----------------------
B = 2          # batch
C = 3          # image channels
H = W = 16     # spatial
K = 4          # patchify kernel / stride (ConvNeXt stem)
HP, WP = H // K, W // K
NP = HP * WP                 # patches per image
CPK = C * K * K              # flattened patch size
R = 32                       # representation_dim (convnextv2_base: 1024)
P = 64                       # projection_dim      (module default: 2048)
D = 16                       # prediction_dim      (module default: 512)

# TODO(synk): the full convnextv2_base stage stack (dw 7x7 convs, GRN blocks,
# downsampling stages) is elided; only the stem-conv + GAP + LayerNorm feature
# path is reproduced here.


def _round_up(n, m):
    return (n + m - 1) // m * m


# ------------------- packed weight slab layout (one bf16 input) --------------
W_LANES = 128   # lane width of the weight slab (all toy col dims <= 128)
_W_SHAPES = {
    "w_stem": (CPK, R),
    "w1": (R, P),
    "w2": (P, P),
    "w3": (P, P),
    "w4": (P, D),
    "w5": (D, P),
}
_W_ORDER = ("w_stem", "w1", "w2", "w3", "w4", "w5")
_W_ROW_OFF = {}
_off = 0
for _name in _W_ORDER:
    _rows, _ = _W_SHAPES[_name]
    _W_ROW_OFF[_name] = _off
    _off += _round_up(_rows, 8)          # keep every weight's rows 8-aligned
W_SLAB_ROWS = _round_up(_off, 8)

# ------------------- packed parameter-vector layout (one f32 input) ----------
# offset-based packing: each vector gets ceil(width/128)*128 lanes starting at
# a cumulative 128-aligned offset (stays correct at production widths).
_VEC_WIDTHS = (
    ("b_stem", R), ("ln_g", R), ("ln_b", R),
    ("g1", P), ("b1", P), ("g2", P), ("b2", P), ("g3", P), ("b3", P),
    ("g4", D), ("b4", D), ("bias5", P),
)
_VEC_OFF = {}
_o = 0
for _name, _w in _VEC_WIDTHS:
    _VEC_OFF[_name] = _o
    _o += _round_up(_w, 128)
VEC_TOTAL = _o


# ----------------------------- kernel helpers ---------------------------------
def _bn_train(x, gamma, beta, eps=1e-5):
    # nn.BatchNorm1d forward (training mode): batch stats, biased variance.
    mu = jnp.mean(x, axis=0, keepdims=True)
    xm = x - mu
    var = jnp.mean(xm * xm, axis=0, keepdims=True)
    return xm * jax.lax.rsqrt(var + eps) * gamma + beta


def _dot_bf16(x_f32, w_bf16):
    # Down-cast the activation at the MXU input only; accumulate in f32.
    return jnp.dot(x_f32.astype(jnp.bfloat16), w_bf16,
                   preferred_element_type=jnp.float32)


# ----------------------------- fused Pallas kernel ----------------------------
def _simsiam_fused_kernel(p_ref, w_ref, vec_ref, out_ref):
    # p_ref:   (B*NP, CPK)        bf16 flattened 4x4 patches
    # w_ref:   (W_SLAB_ROWS, 128) bf16 packed weight slab
    # vec_ref: (1, VEC_TOTAL)     f32  packed bias/BN/LN vectors
    # out_ref: (B, 2*P)           f32  [embeddings | predictions] lane-dense slab
    def vec(name, width):
        return vec_ref[:, pl.ds(_VEC_OFF[name], width)]          # (1, width) f32

    def wmat(name):
        rows, cols = _W_SHAPES[name]
        return w_ref[pl.ds(_W_ROW_OFF[name], rows), pl.ds(0, cols)]  # bf16

    b_stem = vec("b_stem", R)
    ln_g, ln_b = vec("ln_g", R), vec("ln_b", R)
    g1, b1 = vec("g1", P), vec("b1", P)
    g2, b2 = vec("g2", P), vec("b2", P)
    g3, b3 = vec("g3", P), vec("b3", P)
    g4, b4 = vec("g4", D), vec("b4", D)
    bias5 = vec("bias5", P)

    # ---- backbone skeleton: stem conv (as matmul) + GELU + GAP + LayerNorm
    hh = jnp.dot(p_ref[...], wmat("w_stem"),
                 preferred_element_type=jnp.float32) + b_stem          # (B*NP, R) f32
    # TODO(synk): PyTorch nn.GELU default is the exact erf form; tanh approx used.
    hh = jax.nn.gelu(hh, approximate=True)
    # global average pool per image: one sublane reduction over the NP axis.
    pooled = jnp.mean(hh.reshape(B, NP, R), axis=1)                    # (B, R)
    # TODO(synk): eps=1e-6 follows ConvNeXt head-norm convention (nn.LayerNorm
    # default would be 1e-5).
    mu = jnp.mean(pooled, axis=-1, keepdims=True)
    xm = pooled - mu
    var = jnp.mean(xm * xm, axis=-1, keepdims=True)
    feats = xm * jax.lax.rsqrt(var + 1e-6) * ln_g + ln_b               # (B, R)

    # ---- Projector: 3 x (Linear(no bias) -> BN -> ReLU), last layer no ReLU
    h = _dot_bf16(feats, wmat("w1"))
    h = jnp.maximum(_bn_train(h, g1, b1), 0.0)
    h = _dot_bf16(h, wmat("w2"))
    h = jnp.maximum(_bn_train(h, g2, b2), 0.0)
    z = _dot_bf16(h, wmat("w3"))
    # TODO(synk): canonical SimSiam uses affine=False for the final projector BN;
    # Projector class body was not provided, affine BN is used here.
    z = _bn_train(z, g3, b3)                                           # (B, P)

    # ---- Predictor: Linear(no bias) -> BN -> ReLU -> Linear(bias)
    q = _dot_bf16(z, wmat("w4"))
    q = jnp.maximum(_bn_train(q, g4, b4), 0.0)
    pred = _dot_bf16(q, wmat("w5")) + bias5                            # (B, P)

    # single lane-dense (B, 2P)=(2,128) store: emb in lanes [0,P), pred in [P,2P)
    # TODO(synk): once a real batch/view grid axis exists, emit >=8-row output
    # tiles so stores are unmasked 128-wide vst.
    out_ref[...] = jnp.concatenate([z, pred], axis=-1)


# ----------------------------- wrappers ---------------------------------------
_VMEM = lambda: pl.BlockSpec(memory_space=pltpu.MemorySpace.VMEM)


def init_params(key):
    ks = jax.random.split(key, 6)

    def lin(k, fan_in, shape):
        return jax.random.normal(k, shape, jnp.float32) / jnp.sqrt(fan_in)

    weights = dict(
        w_stem=lin(ks[0], CPK, (CPK, R)),
        w1=lin(ks[1], R, (R, P)),
        w2=lin(ks[2], P, (P, P)),
        w3=lin(ks[3], P, (P, P)),
        w4=lin(ks[4], P, (P, D)),
        w5=lin(ks[5], D, (D, P)),
    )
    # pack all matrices into one bf16 slab (cast once, here).
    w_slab = jnp.zeros((W_SLAB_ROWS, W_LANES), jnp.bfloat16)
    for name in _W_ORDER:
        rows, cols = _W_SHAPES[name]
        r0 = _W_ROW_OFF[name]
        w_slab = w_slab.at[r0:r0 + rows, 0:cols].set(
            weights[name].astype(jnp.bfloat16))

    ones = lambda n: jnp.ones((1, n), jnp.float32)
    zeros = lambda n: jnp.zeros((1, n), jnp.float32)
    vec_vals = dict(
        b_stem=zeros(R),
        ln_g=ones(R), ln_b=zeros(R),
        g1=ones(P), b1=zeros(P),
        g2=ones(P), b2=zeros(P),
        g3=ones(P), b3=zeros(P),
        g4=ones(D), b4=zeros(D),
        bias5=zeros(P),
    )
    vec = jnp.zeros((1, VEC_TOTAL), jnp.float32)
    for name, width in _VEC_WIDTHS:
        vec = vec.at[:, _VEC_OFF[name]:_VEC_OFF[name] + width].set(vec_vals[name])

    return dict(w_slab=w_slab, vec=vec)


def timm_simsiam_forward(x, params):
    """x: [B, C, H, W] float32 (NCHW). Returns (embeddings, predictions)."""
    b, c, h, w = x.shape
    assert (b, c, h, w) == (B, C, H, W)
    hp, wp = h // K, w // K
    # patchify (equivalent to Conv2d(C, R, kernel=4, stride=4) as a matmul),
    # done in bf16 so the relayout moves half the bytes.
    # TODO(synk): at 224x224 accept NHWC / fold this gather into the kernel's
    # BlockSpec index_map to avoid the extra HBM relayout pass entirely.
    xb = x.astype(jnp.bfloat16)
    patches = xb.reshape(b, c, hp, K, wp, K).transpose(0, 2, 4, 1, 3, 5)
    patches = patches.reshape(b * hp * wp, c * K * K)

    out = pl.pallas_call(
        _simsiam_fused_kernel,
        out_shape=jax.ShapeDtypeStruct((b, 2 * P), jnp.float32),
        in_specs=[_VMEM(), _VMEM(), _VMEM()],
        out_specs=_VMEM(),
    )(patches, params["w_slab"], params["vec"])

    emb = out[:, :P]
    pred = out[:, P:]
    # forward returns (embeddings.detach(), predictions)
    return jax.lax.stop_gradient(emb), pred


# ----------------------------- main -------------------------------------------
if __name__ == "__main__":
    key = jax.random.PRNGKey(0)
    k_x, k_p = jax.random.split(key)
    x = jax.random.normal(k_x, (B, C, H, W), jnp.float32)
    params = init_params(k_p)

    fwd = jax.jit(timm_simsiam_forward)
    embeddings, predictions = fwd(x, params)
    jax.block_until_ready((embeddings, predictions))

    assert embeddings.shape == (B, P) and predictions.shape == (B, P)
    assert embeddings.dtype == jnp.float32 and predictions.dtype == jnp.float32
    print("KERNEL_OK")
</pallas_src>

<mosaic_0001>
module attributes {stable_mosaic.version = 11 : i64} {
  func.func @_simsiam_fused_kernel(%arg0: memref<32x48xbf16, #tpu.memory_space<vmem>>, %arg1: memref<288x128xbf16, #tpu.memory_space<vmem>>, %arg2: memref<1x1536xf32, #tpu.memory_space<vmem>>, %arg3: memref<2x128xf32, #tpu.memory_space<vmem>>) attributes {dimension_semantics = [], scalar_prefetch = 0 : i64, scratch_operands = 0 : i64, tpu.core_type = #tpu.core_type<tc>} {
    %c0 = arith.constant 0 : index
    %c0_0 = arith.constant 0 : index
    %0 = vector.load %arg2[%c0, %c0_0] : memref<1x1536xf32, #tpu.memory_space<vmem>>, vector<1x32xf32>
    %c0_1 = arith.constant 0 : index
    %c128 = arith.constant 128 : index
    %1 = vector.load %arg2[%c0_1, %c128] : memref<1x1536xf32, #tpu.memory_space<vmem>>, vector<1x32xf32>
    %c0_2 = arith.constant 0 : index
    %c256 = arith.constant 256 : index
    %2 = vector.load %arg2[%c0_2, %c256] : memref<1x1536xf32, #tpu.memory_space<vmem>>, vector<1x32xf32>
    %c0_3 = arith.constant 0 : index
    %c384 = arith.constant 384 : index
    %3 = vector.load %arg2[%c0_3, %c384] : memref<1x1536xf32, #tpu.memory_space<vmem>>, vector<1x64xf32>
    %c0_4 = arith.constant 0 : index
    %c512 = arith.constant 512 : index
    %4 = vector.load %arg2[%c0_4, %c512] : memref<1x1536xf32, #tpu.memory_space<vmem>>, vector<1x64xf32>
    %c0_5 = arith.constant 0 : index
    %c640 = arith.constant 640 : index
    %5 = vector.load %arg2[%c0_5, %c640] : memref<1x1536xf32, #tpu.memory_space<vmem>>, vector<1x64xf32>
    %c0_6 = arith.constant 0 : index
    %c768 = arith.constant 768 : index
    %6 = vector.load %arg2[%c0_6, %c768] : memref<1x1536xf32, #tpu.memory_space<vmem>>, vector<1x64xf32>
    %c0_7 = arith.constant 0 : index
    %c896 = arith.constant 896 : index
    %7 = vector.load %arg2[%c0_7, %c896] : memref<1x1536xf32, #tpu.memory_space<vmem>>, vector<1x64xf32>
    %c0_8 = arith.constant 0 : index
    %c1024 = arith.constant 1024 : index
    %8 = vector.load %arg2[%c0_8, %c1024] : memref<1x1536xf32, #tpu.memory_space<vmem>>, vector<1x64xf32>
    %c0_9 = arith.constant 0 : index
    %c1152 = arith.constant 1152 : index
    %9 = vector.load %arg2[%c0_9, %c1152] : memref<1x1536xf32, #tpu.memory_space<vmem>>, vector<1x16xf32>
    %c0_10 = arith.constant 0 : index
    %c1280 = arith.constant 1280 : index
    %10 = vector.load %arg2[%c0_10, %c1280] : memref<1x1536xf32, #tpu.memory_space<vmem>>, vector<1x16xf32>
    %c0_11 = arith.constant 0 : index
    %c1408 = arith.constant 1408 : index
    %11 = vector.load %arg2[%c0_11, %c1408] : memref<1x1536xf32, #tpu.memory_space<vmem>>, vector<1x64xf32>
    %c0_12 = arith.constant 0 : index
    %c0_13 = arith.constant 0 : index
    %12 = vector.load %arg0[%c0_12, %c0_13] : memref<32x48xbf16, #tpu.memory_space<vmem>>, vector<32x48xbf16>
    %c0_14 = arith.constant 0 : index
    %c0_15 = arith.constant 0 : index
    %13 = vector.load %arg1[%c0_14, %c0_15] : memref<288x128xbf16, #tpu.memory_space<vmem>>, vector<48x32xbf16>
    %cst = arith.constant dense<0.000000e+00> : vector<32x32xf32>
    %14 = tpu.matmul %12, %13, %cst {dimension_numbers = #tpu.dot_dimension_numbers<[1], [0], [0], [1], [0, 0, 1, 1], [], []>} : vector<32x48xbf16>, vector<48x32xbf16>, vector<32x32xf32> -> vector<32x32xf32>
    %15 = vector.broadcast %0 : vector<1x32xf32> to vector<32x32xf32>
    %16 = arith.addf %14, %15 : vector<32x32xf32>
    %17 = arith.mulf %16, %16 : vector<32x32xf32>
    %18 = arith.mulf %16, %17 : vector<32x32xf32>
    %cst_16 = arith.constant 4.471500e-02 : f32
    %19 = vector.broadcast %cst_16 : f32 to vector<32x32xf32>
    %20 = arith.mulf %19, %18 : vector<32x32xf32>
    %21 = arith.addf %16, %20 : vector<32x32xf32>
    %cst_17 = arith.constant 0.797884583 : f32
    %22 = vector.broadcast %cst_17 : f32 to vector<32x32xf32>
    %23 = arith.mulf %22, %21 : vector<32x32xf32>
    %24 = math.tanh %23 : vector<32x32xf32>
    %cst_18 = arith.constant 1.000000e+00 : f32
    %25 = vector.broadcast %cst_18 : f32 to vector<32x32xf32>
    %26 = arith.addf %25, %24 : vector<32x32xf32>
    %cst_19 = arith.constant 5.000000e-01 : f32
    %27 = vector.broadcast %cst_19 : f32 to vector<32x32xf32>
    %28 = arith.mulf %27, %26 : vector<32x32xf32>
    %29 = arith.mulf %16, %28 : vector<32x32xf32>
    %30 = vector.shape_cast %29 : vector<32x32xf32> to vector<2x16x32xf32>
    %cst_20 = arith.constant dense<0.000000e+00> : vector<2x32xf32>
    %31 = vector.multi_reduction <add>, %30, %cst_20 [1] : vector<2x16x32xf32> to vector<2x32xf32>
    %cst_21 = arith.constant 1.600000e+01 : f32
    %32 = vector.broadcast %cst_21 : f32 to vector<2x32xf32>
    %33 = arith.divf %31, %32 : vector<2x32xf32>
    %cst_22 = arith.constant dense<0.000000e+00> : vector<2xf32>
    %34 = vector.multi_reduction <add>, %33, %cst_22 [1] : vector<2x32xf32> to vector<2xf32>
    %35 = vector.shape_cast %34 : vector<2xf32> to vector<2x1xf32>
    %cst_23 = arith.constant 3.200000e+01 : f32
    %36 = vector.broadcast %cst_23 : f32 to vector<2x1xf32>
    %37 = arith.divf %35, %36 : vector<2x1xf32>
    %38 = vector.broadcast %37 : vector<2x1xf32> to vector<2x32xf32>
    %39 = arith.subf %33, %38 : vector<2x32xf32>
    %40 = arith.mulf %39, %39 : vector<2x32xf32>
    %cst_24 = arith.constant dense<0.000000e+00> : vector<2xf32>
    %41 = vector.multi_reduction <add>, %40, %cst_24 [1] : vector<2x32xf32> to vector<2xf32>
    %42 = vector.shape_cast %41 : vector<2xf32> to vector<2x1xf32>
    %cst_25 = arith.constant 3.200000e+01 : f32
    %43 = vector.broadcast %cst_25 : f32 to vector<2x1xf32>
    %44 = arith.divf %42, %43 : vector<2x1xf32>
    %cst_26 = arith.constant 9.99999997E-7 : f32
    %45 = vector.broadcast %cst_26 : f32 to vector<2x1xf32>
    %46 = arith.addf %44, %45 : vector<2x1xf32>
    %47 = math.rsqrt %46 : vector<2x1xf32>
    %48 = vector.broadcast %47 : vector<2x1xf32> to vector<2x32xf32>
    %49 = arith.mulf %39, %48 : vector<2x32xf32>
    %50 = vector.broadcast %1 : vector<1x32xf32> to vector<2x32xf32>
    %51 = arith.mulf %49, %50 : vector<2x32xf32>
    %52 = vector.broadcast %2 : vector<1x32xf32> to vector<2x32xf32>
    %53 = arith.addf %51, %52 : vector<2x32xf32>
    %c48 = arith.constant 48 : index
    %c0_27 = arith.constant 0 : index
    %54 = vector.load %arg1[%c48, %c0_27] : memref<288x128xbf16, #tpu.memory_space<vmem>>, vector<32x64xbf16>
    %55 = arith.truncf %53 : vector<2x32xf32> to vector<2x32xbf16>
    %cst_28 = arith.constant dense<0.000000e+00> : vector<2x64xf32>
    %56 = tpu.matmul %55, %54, %cst_28 {dimension_numbers = #tpu.dot_dimension_numbers<[1], [0], [0], [1], [0, 0, 1, 1], [], []>} : vector<2x32xbf16>, vector<32x64xbf16>, vector<2x64xf32> -> vector<2x64xf32>
    %cst_29 = arith.constant dense<0.000000e+00> : vector<64xf32>
    %57 = vector.multi_reduction <add>, %56, %cst_29 [0] : vector<2x64xf32> to vector<64xf32>
    %58 = vector.shape_cast %57 : vector<64xf32> to vector<1x64xf32>
    %cst_30 = arith.constant 2.000000e+00 : f32
    %59 = vector.broadcast %cst_30 : f32 to vector<1x64xf32>
    %60 = arith.divf %58, %59 : vector<1x64xf32>
    %61 = vector.broadcast %60 : vector<1x64xf32> to vector<2x64xf32>
    %62 = arith.subf %56, %61 : vector<2x64xf32>
    %63 = arith.mulf %62, %62 : vector<2x64xf32>
    %cst_31 = arith.constant dense<0.000000e+00> : vector<64xf32>
    %64 = vector.multi_reduction <add>, %63, %cst_31 [0] : vector<2x64xf32> to vector<64xf32>
    %65 = vector.shape_cast %64 : vector<64xf32> to vector<1x64xf32>
    %cst_32 = arith.constant 2.000000e+00 : f32
    %66 = vector.broadcast %cst_32 : f32 to vector<1x64xf32>
    %67 = arith.divf %65, %66 : vector<1x64xf32>
    %cst_33 = arith.constant 9.99999974E-6 : f32
    %68 = vector.broadcast %cst_33 : f32 to vector<1x64xf32>
    %69 = arith.addf %67, %68 : vector<1x64xf32>
    %70 = math.rsqrt %69 : vector<1x64xf32>
    %71 = vector.broadcast %70 : vector<1x64xf32> to vector<2x64xf32>
    %72 = arith.mulf %62, %71 : vector<2x64xf32>
    %73 = vector.broadcast %3 : vector<1x64xf32> to vector<2x64xf32>
    %74 = arith.mulf %72, %73 : vector<2x64xf32>
    %75 = vector.broadcast %4 : vector<1x64xf32> to vector<2x64xf32>
    %76 = arith.addf %74, %75 : vector<2x64xf32>
    %cst_34 = arith.constant 0.000000e+00 : f32
    %77 = vector.broadcast %cst_34 : f32 to vector<2x64xf32>
    %78 = arith.maximumf %76, %77 : vector<2x64xf32>
    %c80 = arith.constant 80 : index
    %c0_35 = arith.constant 0 : index
    %79 = vector.load %arg1[%c80, %c0_35] : memref<288x128xbf16, #tpu.memory_space<vmem>>, vector<64x64xbf16>
    %80 = arith.truncf %78 : vector<2x64xf32> to vector<2x64xbf16>
    %cst_36 = arith.constant dense<0.000000e+00> : vector<2x64xf32>
    %81 = tpu.matmul %80, %79, %cst_36 {dimension_numbers = #tpu.dot_dimension_numbers<[1], [0], [0], [1], [0, 0, 1, 1], [], []>} : vector<2x64xbf16>, vector<64x64xbf16>, vector<2x64xf32> -> vector<2x64xf32>
    %cst_37 = arith.constant dense<0.000000e+00> : vector<64xf32>
    %82 = vector.multi_reduction <add>, %81, %cst_37 [0] : vector<2x64xf32> to vector<64xf32>
    %83 = vector.shape_cast %82 : vector<64xf32> to vector<1x64xf32>
    %cst_38 = arith.constant 2.000000e+00 : f32
    %84 = vector.broadcast %cst_38 : f32 to vector<1x64xf32>
    %85 = arith.divf %83, %84 : vector<1x64xf32>
    %86 = vector.broadcast %85 : vector<1x64xf32> to vector<2x64xf32>
    %87 = arith.subf %81, %86 : vector<2x64xf32>
    %88 = arith.mulf %87, %87 : vector<2x64xf32>
    %cst_39 = arith.constant dense<0.000000e+00> : vector<64xf32>
    %89 = vector.multi_reduction <add>, %88, %cst_39 [0] : vector<2x64xf32> to vector<64xf32>
    %90 = vector.shape_cast %89 : vector<64xf32> to vector<1x64xf32>
    %cst_40 = arith.constant 2.000000e+00 : f32
    %91 = vector.broadcast %cst_40 : f32 to vector<1x64xf32>
    %92 = arith.divf %90, %91 : vector<1x64xf32>
    %cst_41 = arith.constant 9.99999974E-6 : f32
    %93 = vector.broadcast %cst_41 : f32 to vector<1x64xf32>
    %94 = arith.addf %92, %93 : vector<1x64xf32>
    %95 = math.rsqrt %94 : vector<1x64xf32>
    %96 = vector.broadcast %95 : vector<1x64xf32> to vector<2x64xf32>
    %97 = arith.mulf %87, %96 : vector<2x64xf32>
    %98 = vector.broadcast %5 : vector<1x64xf32> to vector<2x64xf32>
    %99 = arith.mulf %97, %98 : vector<2x64xf32>
    %100 = vector.broadcast %6 : vector<1x64xf32> to vector<2x64xf32>
    %101 = arith.addf %99, %100 : vector<2x64xf32>
    %cst_42 = arith.constant 0.000000e+00 : f32
    %102 = vector.broadcast %cst_42 : f32 to vector<2x64xf32>
    %103 = arith.maximumf %101, %102 : vector<2x64xf32>
    %c144 = arith.constant 144 : index
    %c0_43 = arith.constant 0 : index
    %104 = vector.load %arg1[%c144, %c0_43] : memref<288x128xbf16, #tpu.memory_space<vmem>>, vector<64x64xbf16>
    %105 = arith.truncf %103 : vector<2x64xf32> to vector<2x64xbf16>
    %cst_44 = arith.constant dense<0.000000e+00> : vector<2x64xf32>
    %106 = tpu.matmul %105, %104, %cst_44 {dimension_numbers = #tpu.dot_dimension_numbers<[1], [0], [0], [1], [0, 0, 1, 1], [], []>} : vector<2x64xbf16>, vector<64x64xbf16>, vector<2x64xf32> -> vector<2x64xf32>
    %cst_45 = arith.constant dense<0.000000e+00> : vector<64xf32>
    %107 = vector.multi_reduction <add>, %106, %cst_45 [0] : vector<2x64xf32> to vector<64xf32>
    %108 = vector.shape_cast %107 : vector<64xf32> to vector<1x64xf32>
    %cst_46 = arith.constant 2.000000e+00 : f32
    %109 = vector.broadcast %cst_46 : f32 to vector<1x64xf32>
    %110 = arith.divf %108, %109 : vector<1x64xf32>
    %111 = vector.broadcast %110 : vector<1x64xf32> to vector<2x64xf32>
    %112 = arith.subf %106, %111 : vector<2x64xf32>
    %113 = arith.mulf %112, %112 : vector<2x64xf32>
    %cst_47 = arith.constant dense<0.000000e+00> : vector<64xf32>
    %114 = vector.multi_reduction <add>, %113, %cst_47 [0] : vector<2x64xf32> to vector<64xf32>
    %115 = vector.shape_cast %114 : vector<64xf32> to vector<1x64xf32>
    %cst_48 = arith.constant 2.000000e+00 : f32
    %116 = vector.broadcast %cst_48 : f32 to vector<1x64xf32>
    %117 = arith.divf %115, %116 : vector<1x64xf32>
    %cst_49 = arith.constant 9.99999974E-6 : f32
    %118 = vector.broadcast %cst_49 : f32 to vector<1x64xf32>
    %119 = arith.addf %117, %118 : vector<1x64xf32>
    %120 = math.rsqrt %119 : vector<1x64xf32>
    %121 = vector.broadcast %120 : vector<1x64xf32> to vector<2x64xf32>
    %122 = arith.mulf %112, %121 : vector<2x64xf32>
    %123 = vector.broadcast %7 : vector<1x64xf32> to vector<2x64xf32>
    %124 = arith.mulf %122, %123 : vector<2x64xf32>
    %125 = vector.broadcast %8 : vector<1x64xf32> to vector<2x64xf32>
    %126 = arith.addf %124, %125 : vector<2x64xf32>
    %c208 = arith.constant 208 : index
    %c0_50 = arith.constant 0 : index
    %127 = vector.load %arg1[%c208, %c0_50] : memref<288x128xbf16, #tpu.memory_space<vmem>>, vector<64x16xbf16>
    %128 = arith.truncf %126 : vector<2x64xf32> to vector<2x64xbf16>
    %cst_51 = arith.constant dense<0.000000e+00> : vector<2x16xf32>
    %129 = tpu.matmul %128, %127, %cst_51 {dimension_numbers = #tpu.dot_dimension_numbers<[1], [0], [0], [1], [0, 0, 1, 1], [], []>} : vector<2x64xbf16>, vector<64x16xbf16>, vector<2x16xf32> -> vector<2x16xf32>
    %cst_52 = arith.constant dense<0.000000e+00> : vector<16xf32>
    %130 = vector.multi_reduction <add>, %129, %cst_52 [0] : vector<2x16xf32> to vector<16xf32>
    %131 = vector.shape_cast %130 : vector<16xf32> to vector<1x16xf32>
    %cst_53 = arith.constant 2.000000e+00 : f32
    %132 = vector.broadcast %cst_53 : f32 to vector<1x16xf32>
    %133 = arith.divf %131, %132 : vector<1x16xf32>
    %134 = vector.broadcast %133 : vector<1x16xf32> to vector<2x16xf32>
    %135 = arith.subf %129, %134 : vector<2x16xf32>
    %136 = arith.mulf %135, %135 : vector<2x16xf32>
    %cst_54 = arith.constant dense<0.000000e+00> : vector<16xf32>
    %137 = vector.multi_reduction <add>, %136, %cst_54 [0] : vector<2x16xf32> to vector<16xf32>
    %138 = vector.shape_cast %137 : vector<16xf32> to vector<1x16xf32>
    %cst_55 = arith.constant 2.000000e+00 : f32
    %139 = vector.broadcast %cst_55 : f32 to vector<1x16xf32>
    %140 = arith.divf %138, %139 : vector<1x16xf32>
    %cst_56 = arith.constant 9.99999974E-6 : f32
    %141 = vector.broadcast %cst_56 : f32 to vector<1x16xf32>
    %142 = arith.addf %140, %141 : vector<1x16xf32>
    %143 = math.rsqrt %142 : vector<1x16xf32>
    %144 = vector.broadcast %143 : vector<1x16xf32> to vector<2x16xf32>
    %145 = arith.mulf %135, %144 : vector<2x16xf32>
    %146 = vector.broadcast %9 : vector<1x16xf32> to vector<2x16xf32>
    %147 = arith.mulf %145, %146 : vector<2x16xf32>
    %148 = vector.broadcast %10 : vector<1x16xf32> to vector<2x16xf32>
    %149 = arith.addf %147, %148 : vector<2x16xf32>
    %cst_57 = arith.constant 0.000000e+00 : f32
    %150 = vector.broadcast %cst_57 : f32 to vector<2x16xf32>
    %151 = arith.maximumf %149, %150 : vector<2x16xf32>
    %c272 = arith.constant 272 : index
    %c0_58 = arith.constant 0 : index
    %152 = vector.load %arg1[%c272, %c0_58] : memref<288x128xbf16, #tpu.memory_space<vmem>>, vector<16x64xbf16>
    %153 = arith.truncf %151 : vector<2x16xf32> to vector<2x16xbf16>
    %cst_59 = arith.constant dense<0.000000e+00> : vector<2x64xf32>
    %154 = tpu.matmul %153, %152, %cst_59 {dimension_numbers = #tpu.dot_dimension_numbers<[1], [0], [0], [1], [0, 0, 1, 1], [], []>} : vector<2x16xbf16>, vector<16x64xbf16>, vector<2x64xf32> -> vector<2x64xf32>
    %155 = vector.broadcast %11 : vector<1x64xf32> to vector<2x64xf32>
    %156 = arith.addf %154, %155 : vector<2x64xf32>
    %157 = tpu.concatenate %126, %156 in 1 : vector<2x64xf32>, vector<2x64xf32> -> vector<2x128xf32>
    %c0_60 = arith.constant 0 : index
    %c0_61 = arith.constant 0 : index
    %158 = vector.load %arg3[%c0_60, %c0_61] : memref<2x128xf32, #tpu.memory_space<vmem>>, vector<2x128xf32>
    tpu.vector_store %arg3[%c0_60, %c0_61], %157 {strides = array<i32>} : memref<2x128xf32, #tpu.memory_space<vmem>>, vector<2x128xf32>,
    return
  }
}

</mosaic_0001>

<llo_original>
// kernel: timm_simsiam_forward.1
$region0: #{timm_simsiam_forward.1}
  #allocation0 [shape = 'u32[]', space=smem, size = 0x4, offset = 0x4, fixed_abs, tag = 'smem constant byte address 0x4 - core index']
  #allocation1 [shape = 'u32[144,128]{1,0:T(1,128)}', space=vmem, size = 0x12000, scoped, tag = 'internal scratch']
  %s0 = inlined_call_operand.vmem [shape: bf16[32,48], index: 0, kind: input, shape index: {}]
  %s1 = inlined_call_operand.vmem [shape: bf16[288,128], index: 1, kind: input, shape index: {}]
  %s2 = inlined_call_operand.vmem [shape: f32[1,1536], index: 2, kind: input, shape index: {}]
  %s3 = inlined_call_operand.vmem [shape: f32[2,128], index: 3, kind: output, shape index: {}]
  %s4 = sld [smem:[#allocation0]]
  $region22: #{timm_simsiam_forward.1} parent=0
    _
  %s6 = ssub.s32 1, %s4
  %s7 = scalar_select 0, %s6, %s4
  // Predicated region
  $region2: #{timm_simsiam_forward.1} parent=0 // pred_check
    _
  $region3: #{timm_simsiam_forward.1} parent=0 // pred_check_branch
    %9 = sbr.rel (0) target = $region5
  $region4: #{timm_simsiam_forward.1} parent=0 // pred_region
    _
  $region5: #{timm_simsiam_forward.1} parent=0 // pred_fallthru
    _
  // Predicated region
  $region6: #{timm_simsiam_forward.1} parent=0 // pred_check
    _
  $region7: #{timm_simsiam_forward.1} parent=0 // pred_check_branch
    %11 = sbr.rel (0) target = $region9
  $region8: #{timm_simsiam_forward.1} parent=0 // pred_region
    _
  $region9: #{timm_simsiam_forward.1} parent=0 // pred_fallthru
    _
  // Predicated region
  $region10: #{timm_simsiam_forward.1} parent=0 // pred_check
    _
  $region11: #{timm_simsiam_forward.1} parent=0 // pred_check_branch
    %13 = sbr.rel (0) target = $region13
  $region12: #{timm_simsiam_forward.1} parent=0 // pred_region
    _
  $region13: #{timm_simsiam_forward.1} parent=0 // pred_fallthru
    _
  %v15 = vld [vmem:[%s2] sm:$0x1]
  %v16 = vld [vmem:[%s2 + $0x1] sm:$0x1]
  %v17 = vld [vmem:[%s2 + $0x2] sm:$0x1]
  %v18 = vld [vmem:[%s2 + $0x3] sm:$0x1]
  %v19 = vld [vmem:[%s2 + $0x4] sm:$0x1]
  %v20 = vld [vmem:[%s2 + $0x5] sm:$0x1]
  %v21 = vld [vmem:[%s2 + $0x6] sm:$0x1]
  %v22 = vld [vmem:[%s2 + $0x7] sm:$0x1]
  %v23 = vld [vmem:[%s2 + $0x8] sm:$0x1]
  %v24 = vld [vmem:[%s2 + $0x9] sm:$0x1]
  %v25 = vld [vmem:[%s2 + $0xa] sm:$0x1]
  %v26 = vld [vmem:[%s2 + $0xb] sm:$0x1]
  %v27 = vld [vmem:[%s0] sm:$0xf]
  %v28 = vld [vmem:[%s0 + $0x4] sm:$0xf]
  %v29 = vld [vmem:[%s0 + $0x8] sm:$0xf]
  %v30 = vld [vmem:[%s0 + $0xc] sm:$0xf]
  %v31 = vld [vmem:[%s1] sm:$0xf]
  %v32 = vld [vmem:[%s1 + $0x4] sm:$0xf]
  %v33 = vld [vmem:[%s1 + $0x8] sm:$0xf]
  %v34 = vld [vmem:[%s1 + $0xc] sm:$0xf]
  %v35 = vld [vmem:[%s1 + $0x10] sm:$0xf]
  %v36 = vld [vmem:[%s1 + $0x14] sm:$0xf]
  %v38 = vlaneseq
  %v39 = vshrl.u32 %v38, 7
  %v40 = vsub.s32 0, %v39
  %v41 = vrot.slane %v15, %v40
  %v47 = vunpack.c.l.b16 %v27
  %v48 = vunpack.c.l.b16 %v28
  %v49 = vunpack.c.l.b16 %v29
  %v50 = vunpack.c.l.b16 %v30
  %v51 = vpack.c.b16 %v48, %v47
  %v52 = vpack.c.b16 %v50, %v49
  %v59 = vunpack.c.l.b16 %v31
  %v60 = vunpack.c.l.b16 %v32
  %v61 = vunpack.c.l.b16 %v33
  %v62 = vunpack.c.l.b16 %v34
  %v63 = vunpack.c.l.b16 %v35
  %v64 = vunpack.c.l.b16 %v36
  %v65 = vpack.c.b16 %v60, %v59
  %v66 = vpack.c.b16 %v62, %v61
  %v67 = vpack.c.b16 %v64, %v63
  %vm71 = vcmask 392192
  %v73 = vsel %vm71, %v51, 0
  %v76 = vsel %vm71, %v52, 0
  %78 = vmatprep.subr.bf16.mxu0 0
  %79 = vmatpush1.bf16.msra.mxu0 0
  %80 = vmatprep.subr.bf16.mxu0 0
  %81 = vmatpush1.bf16.msra.mxu0 0
  %82 = vmatprep.subr.bf16.mxu0 0
  %83 = vmatpush1.bf16.msra.mxu0 0
  %84 = vmatprep.subr.bf16.mxu0 0
  %85 = vmatpush1.bf16.msra.mxu0 0
  %86 = vmatprep.subr.bf16.mxu0 0
  %87 = vmatpush1.bf16.msra.mxu0 0
  %88 = vmatprep.subr.bf16.mxu0 0
  %89 = vmatpush1.bf16.msra.mxu0 %v67
  %90 = vmatprep.subr.bf16.mxu0 0
  %91 = vmatpush1.bf16.msra.mxu0 %v66
  %92 = vmatprep.subr.bf16.mxu0 0
  %93 = vmatpush1.bf16.msra.mxu0 %v65
  %94 = vmatprep.subr.bf16.mxu0 0
  %95 = vmatpush2.bf16.msra.mxu0 0
  %96 = vmatprep.subr.bf16.mxu0 0
  %97 = vmatpush2.bf16.msra.mxu0 0
  %98 = vmatprep.subr.bf16.mxu0 0
  %99 = vmatpush2.bf16.msra.mxu0 0
  %100 = vmatprep.subr.bf16.mxu0 0
  %101 = vmatpush2.bf16.msra.mxu0 0
  %102 = vmatprep.subr.bf16.mxu0 0
  %103 = vmatpush2.bf16.msra.mxu0 0
  %104 = vmatprep.subr.bf16.mxu0 0
  %105 = vmatpush2.bf16.msra.mxu0 0
  %106 = vmatprep.subr.bf16.mxu0 0
  %107 = vmatpush2.bf16.msra.mxu0 0
  %108 = vmatprep.subr.bf16.mxu0 0
  %109 = vmatpush2.bf16.msra.mxu0 0
  %110 = vmatprep.mubr.bf16.mxu0 0
  %111 = vmatmul.mubr.bf16.gmra.mxu0 %v73
  %v112 = vpop.f32.mrf.mxu0
  %v113 = vadd.f32 %v41, %v112
  %v114 = vpop.f32.mrf.mxu0
  %v115 = vpop.f32.mrf.mxu0
  %v116 = vadd.f32 %v41, %v115
  %v117 = vpop.f32.mrf.mxu0
  %118 = vmatprep.mubr.bf16.mxu0 0
  %119 = vmatmul.mubr.bf16.gmra.mxu0 %v76
  %v120 = vpop.f32.mrf.mxu0
  %v121 = vadd.f32 %v41, %v120
  %v122 = vpop.f32.mrf.mxu0
  %v123 = vpop.f32.mrf.mxu0
  %v124 = vadd.f32 %v41, %v123
  %v125 = vpop.f32.mrf.mxu0
  %126 = vdwg.mxu0
  %v127 = vmul.f32 %v113, %v113
  %v128 = vmul.f32 %v116, %v116
  %v129 = vmul.f32 %v121, %v121
  %v130 = vmul.f32 %v124, %v124
  %v131 = vmul.f32 %v113, %v127
  %v132 = vmul.f32 %v116, %v128
  %v133 = vmul.f32 %v121, %v129
  %v134 = vmul.f32 %v124, %v130
  %v135 = vmul.f32 %v131, 0.044715
  %v136 = vmul.f32 %v132, 0.044715
  %v137 = vmul.f32 %v133, 0.044715
  %v138 = vmul.f32 %v134, 0.044715
  %v139 = vadd.f32 %v113, %v135
  %v140 = vadd.f32 %v116, %v136
  %v141 = vadd.f32 %v121, %v137
  %v142 = vadd.f32 %v124, %v138
  %v143 = vmul.f32 %v139, 0.7978846
  %v144 = vmul.f32 %v140, 0.7978846
  %v145 = vmul.f32 %v141, 0.7978846
  %v146 = vmul.f32 %v142, 0.7978846
  %v147 = vtanh.pop %v143
  %v148 = vtanh.pop %v144
  %v149 = vtanh.pop %v145
  %v150 = vtanh.pop %v146
  %v151 = vadd.f32 %v147, 1.0
  %v152 = vadd.f32 %v148, 1.0
  %v153 = vadd.f32 %v149, 1.0
  %v154 = vadd.f32 %v150, 1.0
  %v155 = vmul.f32 %v151, 0.5
  %v156 = vmul.f32 %v152, 0.5
  %v157 = vmul.f32 %v153, 0.5
  %v158 = vmul.f32 %v154, 0.5
  %v159 = vmul.f32 %v113, %v155
  %v160 = vmul.f32 %v116, %v156
  %v161 = vmul.f32 %v121, %v157
  %v162 = vmul.f32 %v124, %v158
  %vm163 = vcmask 261120
  %v164 = vsel %vm163, %v159, 0.0
  %v165 = vsel %vm163, %v160, 0.0
  %v166 = vadd.f32 %v164, %v165
  %v167 = vrot.slane %v166, 4
  %v168 = vadd.f32 %v166, %v167
  %v169 = vrot.slane %v168, 2
  %v170 = vadd.f32 %v168, %v169
  %v171 = vrot.slane %v170, 1
  %v172 = vadd.f32 %v170, %v171
  %v173 = vsel %vm163, %v161, 0.0
  %v174 = vsel %vm163, %v162, 0.0
  %v175 = vadd.f32 %v173, %v174
  %v176 = vrot.slane %v175, 4
  %v177 = vadd.f32 %v175, %v176
  %v178 = vrot.slane %v177, 2
  %v179 = vadd.f32 %v177, %v178
  %v180 = vrot.slane %v179, 1
  %v181 = vadd.f32 %v179, %v180
  %v182 = vrcp.pop 16.0
  %v183 = vmul.f32 %v172, %v182
  %v184 = vmul.f32 %v181, %v182
  %vm187 = vcmask 1041409
  %v188 = vsel %vm187, %v184, %v183
  %vm190 = vcmask 254976
  %v191 = vsel %vm190, %v188, 0.0
  %192 = vadd.xlane.f32.xlu0 %v191
  %v193 = vpop.xlane.xlu0 %192
  %v194 = vrcp.pop 32.0
  %v195 = vmul.f32 %v193, %v194
  %v197 = vrot.slane %v195, 1
  %v200 = vsub.f32 %v183, %v195
  %v201 = vsub.f32 %v184, %v197
  %v202 = vmul.f32 %v200, %v200
  %v203 = vmul.f32 %v201, %v201
  %v206 = vrot.slane %v203, 7
  %v207 = vsel %vm187, %v206, %v202
  %v209 = vsel %vm190, %v207, 0.0
  %210 = vadd.xlane.f32.xlu0 %v209
  %v211 = vpop.xlane.xlu0 %210
  %v212 = vmul.f32 %v211, %v194
  %v213 = vadd.f32 %v212, 1e-06
  %v214 = vrsqrt.pop %v213
  %v216 = vrot.slane %v214, 1
  %v219 = vmul.f32 %v200, %v214
  %v220 = vmul.f32 %v201, %v216
  %v222 = vlaneseq
  %v223 = vshrl.u32 %v222, 7
  %v224 = vsub.s32 0, %v223
  %v225 = vrot.slane %v16, %v224
  %v227 = vmul.f32 %v219, %v225
  %v228 = vmul.f32 %v220, %v225
  %v230 = vlaneseq
  %v231 = vshrl.u32 %v230, 7
  %v232 = vsub.s32 0, %v231
  %v233 = vrot.slane %v17, %v232
  %v235 = vadd.f32 %v227, %v233
  %v236 = vadd.f32 %v228, %v233
  %v237 = vld [vmem:[%s1 + $0x18] sm:$0xf]
  %v238 = vld [vmem:[%s1 + $0x1c] sm:$0xf]
  %v239 = vld [vmem:[%s1 + $0x20] sm:$0xf]
  %v240 = vld [vmem:[%s1 + $0x24] sm:$0xf]
  %v241 = vpack.c.bf16 %v235, %v235
  %v242 = vpack.c.bf16 %v236, %v236
  %v245 = vunpack.c.l.b16 %v241
  %v246 = vunpack.c.l.b16 %v242
  %v247 = vrot.slane %v246, 7
  %v248 = vsel %vm187, %v247, %v245
  %v249 = vpack.c.b16 %v248, %v248
  %v254 = vunpack.c.l.b16 %v237
  %v255 = vunpack.c.l.b16 %v238
  %v256 = vunpack.c.l.b16 %v239
  %v257 = vunpack.c.l.b16 %v240
  %v258 = vpack.c.b16 %v255, %v254
  %v259 = vpack.c.b16 %v257, %v256
  %v263 = vsel %vm163, %v249, 0
  %265 = vmatprep.subr.bf16.mxu0 0
  %266 = vmatpush1.bf16.msra.mxu0 0
  %267 = vmatprep.subr.bf16.mxu0 0
  %268 = vmatpush1.bf16.msra.mxu0 0
  %269 = vmatprep.subr.bf16.mxu0 0
  %270 = vmatpush1.bf16.msra.mxu0 0
  %271 = vmatprep.subr.bf16.mxu0 0
  %272 = vmatpush1.bf16.msra.mxu0 0
  %273 = vmatprep.subr.bf16.mxu0 0
  %274 = vmatpush1.bf16.msra.mxu0 0
  %275 = vmatprep.subr.bf16.mxu0 0
  %276 = vmatpush1.bf16.msra.mxu0 0
  %277 = vmatprep.subr.bf16.mxu0 0
  %278 = vmatpush1.bf16.msra.mxu0 %v259
  %279 = vmatprep.subr.bf16.mxu0 0
  %280 = vmatpush1.bf16.msra.mxu0 %v258
  %281 = vmatprep.subr.bf16.mxu0 0
  %282 = vmatpush2.bf16.msra.mxu0 0
  %283 = vmatprep.subr.bf16.mxu0 0
  %284 = vmatpush2.bf16.msra.mxu0 0
  %285 = vmatprep.subr.bf16.mxu0 0
  %286 = vmatpush2.bf16.msra.mxu0 0
  %287 = vmatprep.subr.bf16.mxu0 0
  %288 = vmatpush2.bf16.msra.mxu0 0
  %289 = vmatprep.subr.bf16.mxu0 0
  %290 = vmatpush2.bf16.msra.mxu0 0
  %291 = vmatprep.subr.bf16.mxu0 0
  %292 = vmatpush2.bf16.msra.mxu0 0
  %293 = vmatprep.subr.bf16.mxu0 0
  %294 = vmatpush2.bf16.msra.mxu0 0
  %295 = vmatprep.subr.bf16.mxu0 0
  %296 = vmatpush2.bf16.msra.mxu0 0
  %297 = vmatprep.mubr.bf16.mxu0 0
  %298 = vmatmul.mubr.bf16.gmra.mxu0 %v263
  %v299 = vpop.f32.mrf.mxu0
  %v300 = vadd.f32 0.0, %v299
  %v301 = vpop.f32.mrf.mxu0
  %v302 = vpop.f32.mrf.mxu0
  %v303 = vpop.f32.mrf.mxu0
  %304 = vdwg.mxu0
  %vm305 = vcmask 517120
  %v306 = vsel %vm305, %v300, 0.0
  %v307 = vrot.slane %v306, 4
  %v308 = vadd.f32 %v306, %v307
  %v309 = vrot.slane %v308, 2
  %v310 = vadd.f32 %v308, %v309
  %v311 = vrot.slane %v310, 1
  %v312 = vadd.f32 %v310, %v311
  %v313 = vrcp.pop 2.0
  %v314 = vmul.f32 %v312, %v313
  %v315 = vsub.f32 %v300, %v314
  %v316 = vmul.f32 %v315, %v315
  %v317 = vsel %vm305, %v316, 0.0
  %v318 = vrot.slane %v317, 4
  %v319 = vadd.f32 %v317, %v318
  %v320 = vrot.slane %v319, 2
  %v321 = vadd.f32 %v319, %v320
  %v322 = vrot.slane %v321, 1
  %v323 = vadd.f32 %v321, %v322
  %v324 = vmul.f32 %v323, %v313
  %v325 = vadd.f32 %v324, 1e-05
  %v326 = vrsqrt.pop %v325
  %v327 = vmul.f32 %v315, %v326
  %v329 = vlaneseq
  %v330 = vshrl.u32 %v329, 7
  %v331 = vsub.s32 0, %v330
  %v332 = vrot.slane %v18, %v331
  %v334 = vmul.f32 %v327, %v332
  %v336 = vlaneseq
  %v337 = vshrl.u32 %v336, 7
  %v338 = vsub.s32 0, %v337
  %v339 = vrot.slane %v19, %v338
  %v341 = vadd.f32 %v334, %v339
  %v342 = vmax.f32 %v341, 0.0
  %v343 = vld [vmem:[%s1 + $0x28] sm:$0xf]
  %v344 = vld [vmem:[%s1 + $0x2c] sm:$0xf]
  %v345 = vld [vmem:[%s1 + $0x30] sm:$0xf]
  %v346 = vld [vmem:[%s1 + $0x34] sm:$0xf]
  %v347 = vld [vmem:[%s1 + $0x38] sm:$0xf]
  %v348 = vld [vmem:[%s1 + $0x3c] sm:$0xf]
  %v349 = vld [vmem:[%s1 + $0x40] sm:$0xf]
  %v350 = vld [vmem:[%s1 + $0x44] sm:$0xf]
  %v351 = vpack.c.bf16 %v342, %v342
  %v360 = vunpack.c.l.b16 %v343
  %v361 = vunpack.c.l.b16 %v344
  %v362 = vunpack.c.l.b16 %v345
  %v363 = vunpack.c.l.b16 %v346
  %v364 = vunpack.c.l.b16 %v347
  %v365 = vunpack.c.l.b16 %v348
  %v366 = vunpack.c.l.b16 %v349
  %v367 = vunpack.c.l.b16 %v350
  %v368 = vpack.c.b16 %v361, %v360
  %v369 = vpack.c.b16 %v363, %v362
  %v370 = vpack.c.b16 %v365, %v364
  %v371 = vpack.c.b16 %v367, %v366
  %vm376 = vcmask 523264
  %v378 = vsel %vm376, %v351, 0
  %380 = vmatprep.subr.bf16.mxu0 0
  %381 = vmatpush1.bf16.msra.mxu0 0
  %382 = vmatprep.subr.bf16.mxu0 0
  %383 = vmatpush1.bf16.msra.mxu0 0
  %384 = vmatprep.subr.bf16.mxu0 0
  %385 = vmatpush1.bf16.msra.mxu0 0
  %386 = vmatprep.subr.bf16.mxu0 0
  %387 = vmatpush1.bf16.msra.mxu0 0
  %388 = vmatprep.subr.bf16.mxu0 0
  %389 = vmatpush1.bf16.msra.mxu0 %v371
  %390 = vmatprep.subr.bf16.mxu0 0
  %391 = vmatpush1.bf16.msra.mxu0 %v370
  %392 = vmatprep.subr.bf16.mxu0 0
  %393 = vmatpush1.bf16.msra.mxu0 %v369
  %394 = vmatprep.subr.bf16.mxu0 0
  %395 = vmatpush1.bf16.msra.mxu0 %v368
  %396 = vmatprep.subr.bf16.mxu0 0
  %397 = vmatpush2.bf16.msra.mxu0 0
  %398 = vmatprep.subr.bf16.mxu0 0
  %399 = vmatpush2.bf16.msra.mxu0 0
  %400 = vmatprep.subr.bf16.mxu0 0
  %401 = vmatpush2.bf16.msra.mxu0 0
  %402 = vmatprep.subr.bf16.mxu0 0
  %403 = vmatpush2.bf16.msra.mxu0 0
  %404 = vmatprep.subr.bf16.mxu0 0
  %405 = vmatpush2.bf16.msra.mxu0 0
  %406 = vmatprep.subr.bf16.mxu0 0
  %407 = vmatpush2.bf16.msra.mxu0 0
  %408 = vmatprep.subr.bf16.mxu0 0
  %409 = vmatpush2.bf16.msra.mxu0 0
  %410 = vmatprep.subr.bf16.mxu0 0
  %411 = vmatpush2.bf16.msra.mxu0 0
  %412 = vmatprep.mubr.bf16.mxu0 0
  %413 = vmatmul.mubr.bf16.gmra.mxu0 %v378
  %v414 = vpop.f32.mrf.mxu0
  %v415 = vadd.f32 0.0, %v414
  %v416 = vpop.f32.mrf.mxu0
  %v417 = vpop.f32.mrf.mxu0
  %v418 = vpop.f32.mrf.mxu0
  %419 = vdwg.mxu0
  %v420 = vsel %vm305, %v415, 0.0
  %v421 = vrot.slane %v420, 4
  %v422 = vadd.f32 %v420, %v421
  %v423 = vrot.slane %v422, 2
  %v424 = vadd.f32 %v422, %v423
  %v425 = vrot.slane %v424, 1
  %v426 = vadd.f32 %v424, %v425
  %v427 = vmul.f32 %v426, %v313
  %v428 = vsub.f32 %v415, %v427
  %v429 = vmul.f32 %v428, %v428
  %v430 = vsel %vm305, %v429, 0.0
  %v431 = vrot.slane %v430, 4
  %v432 = vadd.f32 %v430, %v431
  %v433 = vrot.slane %v432, 2
  %v434 = vadd.f32 %v432, %v433
  %v435 = vrot.slane %v434, 1
  %v436 = vadd.f32 %v434, %v435
  %v437 = vmul.f32 %v436, %v313
  %v438 = vadd.f32 %v437, 1e-05
  %v439 = vrsqrt.pop %v438
  %v440 = vmul.f32 %v428, %v439
  %v442 = vlaneseq
  %v443 = vshrl.u32 %v442, 7
  %v444 = vsub.s32 0, %v443
  %v445 = vrot.slane %v20, %v444
  %v447 = vmul.f32 %v440, %v445
  %v449 = vlaneseq
  %v450 = vshrl.u32 %v449, 7
  %v451 = vsub.s32 0, %v450
  %v452 = vrot.slane %v21, %v451
  %v454 = vadd.f32 %v447, %v452
  %v455 = vmax.f32 %v454, 0.0
  %v456 = vld [vmem:[%s1 + $0x48] sm:$0xf]
  %v457 = vld [vmem:[%s1 + $0x4c] sm:$0xf]
  %v458 = vld [vmem:[%s1 + $0x50] sm:$0xf]
  %v459 = vld [vmem:[%s1 + $0x54] sm:$0xf]
  %v460 = vld [vmem:[%s1 + $0x58] sm:$0xf]
  %v461 = vld [vmem:[%s1 + $0x5c] sm:$0xf]
  %v462 = vld [vmem:[%s1 + $0x60] sm:$0xf]
  %v463 = vld [vmem:[%s1 + $0x64] sm:$0xf]
  %v464 = vpack.c.bf16 %v455, %v455
  %v473 = vunpack.c.l.b16 %v456
  %v474 = vunpack.c.l.b16 %v457
  %v475 = vunpack.c.l.b16 %v458
  %v476 = vunpack.c.l.b16 %v459
  %v477 = vunpack.c.l.b16 %v460
  %v478 = vunpack.c.l.b16 %v461
  %v479 = vunpack.c.l.b16 %v462
  %v480 = vunpack.c.l.b16 %v463
  %v481 = vpack.c.b16 %v474, %v473
  %v482 = vpack.c.b16 %v476, %v475
  %v483 = vpack.c.b16 %v478, %v477
  %v484 = vpack.c.b16 %v480, %v479
  %v490 = vsel %vm376, %v464, 0
  %492 = vmatprep.subr.bf16.mxu0 0
  %493 = vmatpush1.bf16.msra.mxu0 0
  %494 = vmatprep.subr.bf16.mxu0 0
  %495 = vmatpush1.bf16.msra.mxu0 0
  %496 = vmatprep.subr.bf16.mxu0 0
  %497 = vmatpush1.bf16.msra.mxu0 0
  %498 = vmatprep.subr.bf16.mxu0 0
  %499 = vmatpush1.bf16.msra.mxu0 0
  %500 = vmatprep.subr.bf16.mxu0 0
  %501 = vmatpush1.bf16.msra.mxu0 %v484
  %502 = vmatprep.subr.bf16.mxu0 0
  %503 = vmatpush1.bf16.msra.mxu0 %v483
  %504 = vmatprep.subr.bf16.mxu0 0
  %505 = vmatpush1.bf16.msra.mxu0 %v482
  %506 = vmatprep.subr.bf16.mxu0 0
  %507 = vmatpush1.bf16.msra.mxu0 %v481
  %508 = vmatprep.subr.bf16.mxu0 0
  %509 = vmatpush2.bf16.msra.mxu0 0
  %510 = vmatprep.subr.bf16.mxu0 0
  %511 = vmatpush2.bf16.msra.mxu0 0
  %512 = vmatprep.subr.bf16.mxu0 0
  %513 = vmatpush2.bf16.msra.mxu0 0
  %514 = vmatprep.subr.bf16.mxu0 0
  %515 = vmatpush2.bf16.msra.mxu0 0
  %516 = vmatprep.subr.bf16.mxu0 0
  %517 = vmatpush2.bf16.msra.mxu0 0
  %518 = vmatprep.subr.bf16.mxu0 0
  %519 = vmatpush2.bf16.msra.mxu0 0
  %520 = vmatprep.subr.bf16.mxu0 0
  %521 = vmatpush2.bf16.msra.mxu0 0
  %522 = vmatprep.subr.bf16.mxu0 0
  %523 = vmatpush2.bf16.msra.mxu0 0
  %524 = vmatprep.mubr.bf16.mxu0 0
  %525 = vmatmul.mubr.bf16.gmra.mxu0 %v490
  %v526 = vpop.f32.mrf.mxu0
  %v527 = vadd.f32 0.0, %v526
  %v528 = vpop.f32.mrf.mxu0
  %v529 = vpop.f32.mrf.mxu0
  %v530 = vpop.f32.mrf.mxu0
  %531 = vdwg.mxu0
  %v532 = vsel %vm305, %v527, 0.0
  %v533 = vrot.slane %v532, 4
  %v534 = vadd.f32 %v532, %v533
  %v535 = vrot.slane %v534, 2
  %v536 = vadd.f32 %v534, %v535
  %v537 = vrot.slane %v536, 1
  %v538 = vadd.f32 %v536, %v537
  %v539 = vmul.f32 %v538, %v313
  %v540 = vsub.f32 %v527, %v539
  %v541 = vmul.f32 %v540, %v540
  %v542 = vsel %vm305, %v541, 0.0
  %v543 = vrot.slane %v542, 4
  %v544 = vadd.f32 %v542, %v543
  %v545 = vrot.slane %v544, 2
  %v546 = vadd.f32 %v544, %v545
  %v547 = vrot.slane %v546, 1
  %v548 = vadd.f32 %v546, %v547
  %v549 = vmul.f32 %v548, %v313
  %v550 = vadd.f32 %v549, 1e-05
  %v551 = vrsqrt.pop %v550
  %v552 = vmul.f32 %v540, %v551
  %v554 = vlaneseq
  %v555 = vshrl.u32 %v554, 7
  %v556 = vsub.s32 0, %v555
  %v557 = vrot.slane %v22, %v556
  %v559 = vmul.f32 %v552, %v557
  %v561 = vlaneseq
  %v562 = vshrl.u32 %v561, 7
  %v563 = vsub.s32 0, %v562
  %v564 = vrot.slane %v23, %v563
  %v566 = vadd.f32 %v559, %v564
  %v567 = vld [vmem:[%s1 + $0x68] sm:$0xf]
  %v568 = vld [vmem:[%s1 + $0x6c] sm:$0xf]
  %v569 = vld [vmem:[%s1 + $0x70] sm:$0xf]
  %v570 = vld [vmem:[%s1 + $0x74] sm:$0xf]
  %v571 = vld [vmem:[%s1 + $0x78] sm:$0xf]
  %v572 = vld [vmem:[%s1 + $0x7c] sm:$0xf]
  %v573 = vld [vmem:[%s1 + $0x80] sm:$0xf]
  %v574 = vld [vmem:[%s1 + $0x84] sm:$0xf]
  %v575 = vpack.c.bf16 %v566, %v566
  %v584 = vunpack.c.l.b16 %v567
  %v585 = vunpack.c.l.b16 %v568
  %v586 = vunpack.c.l.b16 %v569
  %v587 = vunpack.c.l.b16 %v570
  %v588 = vunpack.c.l.b16 %v571
  %v589 = vunpack.c.l.b16 %v572
  %v590 = vunpack.c.l.b16 %v573
  %v591 = vunpack.c.l.b16 %v574
  %v592 = vpack.c.b16 %v585, %v584
  %v593 = vpack.c.b16 %v587, %v586
  %v594 = vpack.c.b16 %v589, %v588
  %v595 = vpack.c.b16 %v591, %v590
  %v601 = vsel %vm376, %v575, 0
  %603 = vmatprep.subr.bf16.mxu0 0
  %604 = vmatpush1.bf16.msra.mxu0 0
  %605 = vmatprep.subr.bf16.mxu0 0
  %606 = vmatpush1.bf16.msra.mxu0 0
  %607 = vmatprep.subr.bf16.mxu0 0
  %608 = vmatpush1.bf16.msra.mxu0 0
  %609 = vmatprep.subr.bf16.mxu0 0
  %610 = vmatpush1.bf16.msra.mxu0 0
  %611 = vmatprep.subr.bf16.mxu0 0
  %612 = vmatpush1.bf16.msra.mxu0 %v595
  %613 = vmatprep.subr.bf16.mxu0 0
  %614 = vmatpush1.bf16.msra.mxu0 %v594
  %615 = vmatprep.subr.bf16.mxu0 0
  %616 = vmatpush1.bf16.msra.mxu0 %v593
  %617 = vmatprep.subr.bf16.mxu0 0
  %618 = vmatpush1.bf16.msra.mxu0 %v592
  %619 = vmatprep.subr.bf16.mxu0 0
  %620 = vmatpush2.bf16.msra.mxu0 0
  %621 = vmatprep.subr.bf16.mxu0 0
  %622 = vmatpush2.bf16.msra.mxu0 0
  %623 = vmatprep.subr.bf16.mxu0 0
  %624 = vmatpush2.bf16.msra.mxu0 0
  %625 = vmatprep.subr.bf16.mxu0 0
  %626 = vmatpush2.bf16.msra.mxu0 0
  %627 = vmatprep.subr.bf16.mxu0 0
  %628 = vmatpush2.bf16.msra.mxu0 0
  %629 = vmatprep.subr.bf16.mxu0 0
  %630 = vmatpush2.bf16.msra.mxu0 0
  %631 = vmatprep.subr.bf16.mxu0 0
  %632 = vmatpush2.bf16.msra.mxu0 0
  %633 = vmatprep.subr.bf16.mxu0 0
  %634 = vmatpush2.bf16.msra.mxu0 0
  %635 = vmatprep.mubr.bf16.mxu0 0
  %636 = vmatmul.mubr.bf16.gmra.mxu0 %v601
  %v637 = vpop.f32.mrf.mxu0
  %v638 = vadd.f32 0.0, %v637
  %v639 = vpop.f32.mrf.mxu0
  %v640 = vpop.f32.mrf.mxu0
  %v641 = vpop.f32.mrf.mxu0
  %642 = vdwg.mxu0
  %vm643 = vcmask 123904
  %v644 = vsel %vm643, %v638, 0.0
  %v645 = vrot.slane %v644, 4
  %v646 = vadd.f32 %v644, %v645
  %v647 = vrot.slane %v646, 2
  %v648 = vadd.f32 %v646, %v647
  %v649 = vrot.slane %v648, 1
  %v650 = vadd.f32 %v648, %v649
  %v651 = vmul.f32 %v650, %v313
  %v652 = vsub.f32 %v638, %v651
  %v653 = vmul.f32 %v652, %v652
  %v654 = vsel %vm643, %v653, 0.0
  %v655 = vrot.slane %v654, 4
  %v656 = vadd.f32 %v654, %v655
  %v657 = vrot.slane %v656, 2
  %v658 = vadd.f32 %v656, %v657
  %v659 = vrot.slane %v658, 1
  %v660 = vadd.f32 %v658, %v659
  %v661 = vmul.f32 %v660, %v313
  %v662 = vadd.f32 %v661, 1e-05
  %v663 = vrsqrt.pop %v662
  %v664 = vmul.f32 %v652, %v663
  %v666 = vlaneseq
  %v667 = vshrl.u32 %v666, 7
  %v668 = vsub.s32 0, %v667
  %v669 = vrot.slane %v24, %v668
  %v671 = vmul.f32 %v664, %v669
  %v673 = vlaneseq
  %v674 = vshrl.u32 %v673, 7
  %v675 = vsub.s32 0, %v674
  %v676 = vrot.slane %v25, %v675
  %v678 = vadd.f32 %v671, %v676
  %v679 = vmax.f32 %v678, 0.0
  %v680 = vld [vmem:[%s1 + $0x88] sm:$0xf]
  %v681 = vld [vmem:[%s1 + $0x8c] sm:$0xf]
  %v682 = vpack.c.bf16 %v679, %v679
  %v684 = vlaneseq
  %v685 = vshrl.u32 %v684, 7
  %v686 = vsub.s32 0, %v685
  %v687 = vrot.slane %v26, %v686
  %v691 = vunpack.c.l.b16 %v680
  %v692 = vunpack.c.l.b16 %v681
  %v693 = vpack.c.b16 %v692, %v691
  %vm695 = vcmask 130048
  %v697 = vsel %vm695, %v682, 0
  %699 = vmatprep.subr.bf16.mxu0 0
  %700 = vmatpush1.bf16.msra.mxu0 0
  %701 = vmatprep.subr.bf16.mxu0 0
  %702 = vmatpush1.bf16.msra.mxu0 0
  %703 = vmatprep.subr.bf16.mxu0 0
  %704 = vmatpush1.bf16.msra.mxu0 0
  %705 = vmatprep.subr.bf16.mxu0 0
  %706 = vmatpush1.bf16.msra.mxu0 0
  %707 = vmatprep.subr.bf16.mxu0 0
  %708 = vmatpush1.bf16.msra.mxu0 0
  %709 = vmatprep.subr.bf16.mxu0 0
  %710 = vmatpush1.bf16.msra.mxu0 0
  %711 = vmatprep.subr.bf16.mxu0 0
  %712 = vmatpush1.bf16.msra.mxu0 0
  %713 = vmatprep.subr.bf16.mxu0 0
  %714 = vmatpush1.bf16.msra.mxu0 %v693
  %715 = vmatprep.subr.bf16.mxu0 0
  %716 = vmatpush2.bf16.msra.mxu0 0
  %717 = vmatprep.subr.bf16.mxu0 0
  %718 = vmatpush2.bf16.msra.mxu0 0
  %719 = vmatprep.subr.bf16.mxu0 0
  %720 = vmatpush2.bf16.msra.mxu0 0
  %721 = vmatprep.subr.bf16.mxu0 0
  %722 = vmatpush2.bf16.msra.mxu0 0
  %723 = vmatprep.subr.bf16.mxu0 0
  %724 = vmatpush2.bf16.msra.mxu0 0
  %725 = vmatprep.subr.bf16.mxu0 0
  %726 = vmatpush2.bf16.msra.mxu0 0
  %727 = vmatprep.subr.bf16.mxu0 0
  %728 = vmatpush2.bf16.msra.mxu0 0
  %729 = vmatprep.subr.bf16.mxu0 0
  %730 = vmatpush2.bf16.msra.mxu0 0
  %731 = vmatprep.mubr.bf16.mxu0 0
  %732 = vmatmul.mubr.bf16.gmra.mxu0 %v697
  %v733 = vpop.f32.mrf.mxu0
  %v734 = vadd.f32 %v687, %v733
  %v735 = vpop.f32.mrf.mxu0
  %v736 = vpop.f32.mrf.mxu0
  %v737 = vpop.f32.mrf.mxu0
  %738 = vdwg.mxu0
  %740 = vrot.lane.b32.xlu0 %v734, 64
  %v741 = vpop.permute.xlu0 %740
  %v743 = vsel %vm376, %v566, %v741
  %744 = vst [vmem:[%s3] sm:$0x3] %v743
  // Predicated region
  $region14: #{timm_simsiam_forward.1} parent=0 // pred_check
    _
  $region15: #{timm_simsiam_forward.1} parent=0 // pred_check_branch
    %746 = sbr.rel (0) target = $region17
  $region16: #{timm_simsiam_forward.1} parent=0 // pred_region
    _
  $region17: #{timm_simsiam_forward.1} parent=0 // pred_fallthru
    _
  // Predicated region
  $region18: #{timm_simsiam_forward.1} parent=0 // pred_check
    _
  $region19: #{timm_simsiam_forward.1} parent=0 // pred_check_branch
    %748 = sbr.rel (0) target = $region21
  $region20: #{timm_simsiam_forward.1} parent=0 // pred_region
    _
  $region21: #{timm_simsiam_forward.1} parent=0 // pred_fallthru
    _

</llo_original>
